<compile_context>
chip_gen: v5e
topology: v5e:2x2
jax: 0.10.0
libtpu: 0.0.40
codegen_flags: <defaults>
</compile_context>

<pallas_src>
import functools
import math

import jax
import jax.numpy as jnp
from jax.experimental import pallas as pl
from jax.experimental.pallas import tpu as pltpu


# ---------------------------------------------------------------------------
# Kernel 1a: QKV projection (distinct q/k/v inputs) -> head-major outputs.
# ---------------------------------------------------------------------------
def _qkv_proj_kernel(xq_ref, xk_ref, xv_ref, w_ref, b_ref,
                     fq_ref, fk_ref, fv_ref, *, num_heads):
    Bt, Ts, D = xq_ref.shape
    H = num_heads
    d_k = D // H

    def proj(x_ref, j, o_ref):
        x = x_ref[...].reshape(Bt * Ts, D)
        y = jnp.dot(x, w_ref[j], preferred_element_type=jnp.float32) + b_ref[j]
        # Head split done ONCE here (per element), so the flash kernel's inner
        # loop needs no relayout.
        o_ref[...] = (y.reshape(Bt, Ts, H, d_k)
                        .transpose(0, 2, 1, 3)
                        .astype(o_ref.dtype))

    proj(xq_ref, 0, fq_ref)
    proj(xk_ref, 1, fk_ref)
    proj(xv_ref, 2, fv_ref)


# ---------------------------------------------------------------------------
# Kernel 1b: fused QKV projection for self-attention (q is k is v):
#            one input slab, one (D, 3D) GEMM.
# ---------------------------------------------------------------------------
def _qkv_proj_fused_kernel(x_ref, w_ref, b_ref,
                           fq_ref, fk_ref, fv_ref, *, num_heads):
    Bt, Ts, D = x_ref.shape
    H = num_heads
    d_k = D // H
    x = x_ref[...].reshape(Bt * Ts, D)
    y = jnp.dot(x, w_ref[...], preferred_element_type=jnp.float32) + b_ref[...]
    for j, o_ref in enumerate((fq_ref, fk_ref, fv_ref)):
        o_ref[...] = (y[:, j * D:(j + 1) * D]
                        .reshape(Bt, Ts, H, d_k)
                        .transpose(0, 2, 1, 3)
                        .astype(o_ref.dtype))


# ---------------------------------------------------------------------------
# Kernel 2: KV-tiled online-softmax attention + fused output projection.
#   q_ref: (Bt, H, Tq, d_k)   k_ref/v_ref: (Bt, H, Tk, d_k)
#   out_ref: (Bt, Tq, D)      scratch m/l: (Bt, H, Tq, 1), acc: (Bt, H, Tq, d_k)
# ---------------------------------------------------------------------------
def _flash_attn_kernel(q_ref, k_ref, v_ref, wo_ref, bo_ref, out_ref,
                       m_sc, l_sc, acc_sc):
    Bt, H, Tq, d_k = q_ref.shape
    D = H * d_k
    ki = pl.program_id(2)

    @pl.when(ki == 0)
    def _init():
        m_sc[...] = jnp.full(m_sc.shape, -jnp.inf, dtype=m_sc.dtype)
        l_sc[...] = jnp.zeros(l_sc.shape, dtype=l_sc.dtype)
        acc_sc[...] = jnp.zeros(acc_sc.shape, dtype=acc_sc.dtype)

    # (Bt, H, Tq, Tk) scores with heads batched: no per-head lane slicing, no
    # explicit K transpose, f32 accumulation on the MXU. (1/sqrt(d_k) already
    # folded into the Q projection weights.)
    s = jnp.einsum('bhqd,bhkd->bhqk', q_ref[...], k_ref[...],
                   preferred_element_type=jnp.float32)

    m_prev = m_sc[...]
    m_new = jnp.maximum(m_prev, jnp.max(s, axis=-1, keepdims=True))
    alpha = jnp.exp(m_prev - m_new)                       # == 0 at ki == 0
    p = jnp.exp(s - m_new)                                # f32 softmax math
    l_sc[...] = alpha * l_sc[...] + jnp.sum(p, axis=-1, keepdims=True)
    acc_sc[...] = alpha * acc_sc[...] + jnp.einsum(
        'bhqk,bhkd->bhqd', p.astype(v_ref.dtype), v_ref[...],
        preferred_element_type=jnp.float32)
    m_sc[...] = m_new

    @pl.when(ki == pl.num_programs(2) - 1)
    def _finalize():
        # Normalize with the EUP approximate reciprocal (free bundle slot).
        ctx = acc_sc[...] * pl.reciprocal(l_sc[...], approx=True)  # (Bt,H,Tq,d_k)
        # Merge heads ONCE per q tile, then fuse the output projection so the
        # written block is lane-dense (width D).
        ctx = (ctx.transpose(0, 2, 1, 3)
                  .reshape(Bt * Tq, D)
                  .astype(wo_ref.dtype))
        out = (jnp.dot(ctx, wo_ref[...], preferred_element_type=jnp.float32)
               + bo_ref[...])
        out_ref[...] = out.reshape(Bt, Tq, D).astype(out_ref.dtype)


# ---------------------------------------------------------------------------
# Tiling helpers (generation-aware).
# ---------------------------------------------------------------------------
def _vmem_capacity_bytes():
    """Per-core VMEM capacity; conservative 64 MiB (v7x) fallback."""
    try:
        cap = getattr(pltpu.get_tpu_info(), "vmem_capacity_bytes", None)
        if cap:
            return int(cap)
    except Exception:
        pass
    return 64 * 1024 * 1024


def _seq_tile_options(S, cap=512):
    opts = [d for d in range(S, 0, -1)
            if S % d == 0 and (d == S or d % 8 == 0)]
    capped = [d for d in opts if d <= cap]
    return capped if capped else [opts[-1]]


def _batch_block_options(B):
    # Cap at B//2 so the batch grid has >=2 parallel steps (v7x has 2 TCs).
    cap = B if B == 1 else max(1, B // 2)
    return [d for d in range(cap, 0, -1) if B % d == 0]


def _choose_flash_tiles(B, S, D, H, act_itemsize, vmem_bytes):
    d_k = D // H

    def est(bt, tq, tk):
        io = act_itemsize
        act = (2 * bt * H * tq * d_k * io          # Q block (double buffered)
               + 2 * 2 * bt * H * tk * d_k * io    # K and V blocks
               + 2 * bt * tq * D * io)             # output block
        wgt = 2 * (D * D * io + D * 4)             # Wo + bo (double buffered)
        scr = 2 * bt * H * tq * 128 * 4 + bt * H * tq * d_k * 4   # m,l (lane-padded), acc
        tmp = 3 * bt * H * tq * tk * 4 + 2 * bt * tq * D * 4      # score/prob + ctx temps
        return act + wgt + scr + tmp

    budget = int(0.50 * vmem_bytes)
    seq_opts = _seq_tile_options(S)
    b_opts = _batch_block_options(B)
    for tq in seq_opts:
        for tk in seq_opts:
            for bt in b_opts:
                if est(bt, tq, tk) <= budget:
                    return bt, tq, tk
    return b_opts[-1], seq_opts[-1], seq_opts[-1]


def _choose_proj_tiles(B, S, D, act_itemsize, vmem_bytes, fused):
    def est(bt, ts):
        io = act_itemsize
        n_in = 1 if fused else 3
        act = 2 * (n_in + 3) * bt * ts * D * io    # inputs + 3 outputs, double buffered
        wgt = 2 * (3 * D * D * io + 3 * D * 4)
        tmp = 6 * bt * ts * D * 4                  # f32 GEMM results / relayouts
        return act + wgt + tmp

    budget = int(0.50 * vmem_bytes)
    seq_opts = _seq_tile_options(S)
    b_opts = _batch_block_options(B)
    for bt in b_opts:                              # prefer M = bt*ts >= 256 rows
        for ts in seq_opts:
            if bt * ts >= 256 and est(bt, ts) <= budget:
                return bt, ts
    for bt in b_opts:
        for ts in seq_opts:
            if est(bt, ts) <= budget:
                return bt, ts
    return b_opts[-1], seq_opts[-1]


# ---------------------------------------------------------------------------
# Wrapper.
# ---------------------------------------------------------------------------
def multi_headed_attention(q, k, v, params, num_heads, *, mxu_bf16=False):
    B, S, D = q.shape
    H = num_heads
    assert D % H == 0
    d_k = D // H
    wq, bq, wk, bk, wv, bv, wo, bo = params

    out_dtype = q.dtype
    f32 = jnp.float32
    # MXU operand dtype: keep input dtype; optionally f32 -> bf16 on request.
    cdtype = jnp.bfloat16 if (mxu_bf16 and q.dtype == jnp.float32) else q.dtype
    act_size = jnp.dtype(cdtype).itemsize

    # Fold 1/sqrt(d_k) into the Q projection parameters (tiny, one-time).
    scale = 1.0 / math.sqrt(d_k)
    wq_s = wq * scale
    bq_s = bq * scale

    vmem_cap = _vmem_capacity_bytes()
    vmem_limit = int(0.75 * vmem_cap)    # ~48 MiB on v7x, ~96 MiB on v5e/v6e

    self_attn = (q is k) and (k is v)

    # ------------------- Phase 1: QKV projection kernel ---------------------
    bt_p, ts_p = _choose_proj_tiles(B, S, D, act_size, vmem_cap, self_attn)
    x_spec = pl.BlockSpec((bt_p, ts_p, D), lambda b, s: (b, s, 0))
    head_spec = pl.BlockSpec((bt_p, H, ts_p, d_k), lambda b, s: (b, 0, s, 0))
    qkv_out_shape = tuple(jax.ShapeDtypeStruct((B, H, S, d_k), cdtype)
                          for _ in range(3))
    proj_params = pltpu.CompilerParams(
        dimension_semantics=("parallel", "parallel"),
        vmem_limit_bytes=vmem_limit)

    if self_attn:
        w_fused = jnp.concatenate([wq_s, wk, wv], axis=1).astype(cdtype)      # (D, 3D)
        b_fused = jnp.concatenate([bq_s, bk, bv], axis=0).astype(f32)[None]   # (1, 3D)
        fq, fk, fv = pl.pallas_call(
            functools.partial(_qkv_proj_fused_kernel, num_heads=H),
            out_shape=qkv_out_shape,
            grid_spec=pltpu.PrefetchScalarGridSpec(
                num_scalar_prefetch=0,
                grid=(B // bt_p, S // ts_p),
                in_specs=[x_spec,
                          pl.BlockSpec((D, 3 * D), lambda b, s: (0, 0)),
                          pl.BlockSpec((1, 3 * D), lambda b, s: (0, 0))],
                out_specs=[head_spec, head_spec, head_spec],
            ),
            compiler_params=proj_params,
        )(q.astype(cdtype), w_fused, b_fused)
    else:
        w_qkv = jnp.stack([wq_s, wk, wv], axis=0).astype(cdtype)              # (3, D, D)
        b_qkv = jnp.stack([bq_s, bk, bv], axis=0).astype(f32)[:, None, :]     # (3, 1, D)
        fq, fk, fv = pl.pallas_call(
            functools.partial(_qkv_proj_kernel, num_heads=H),
            out_shape=qkv_out_shape,
            grid_spec=pltpu.PrefetchScalarGridSpec(
                num_scalar_prefetch=0,
                grid=(B // bt_p, S // ts_p),
                in_specs=[x_spec, x_spec, x_spec,
                          pl.BlockSpec((3, D, D), lambda b, s: (0, 0, 0)),
                          pl.BlockSpec((3, 1, D), lambda b, s: (0, 0, 0))],
                out_specs=[head_spec, head_spec, head_spec],
            ),
            compiler_params=proj_params,
        )(q.astype(cdtype), k.astype(cdtype), v.astype(cdtype), w_qkv, b_qkv)

    # --------------- Phase 2: flash attention + output projection -----------
    bt, tq, tk = _choose_flash_tiles(B, S, D, H, act_size, vmem_cap)
    wo_c = wo.astype(cdtype)
    bo2 = bo.astype(f32).reshape(1, D)

    q_spec = pl.BlockSpec((bt, H, tq, d_k), lambda b, qi, ki: (b, 0, qi, 0))
    kv_spec = pl.BlockSpec((bt, H, tk, d_k), lambda b, qi, ki: (b, 0, ki, 0))

    out = pl.pallas_call(
        _flash_attn_kernel,
        out_shape=jax.ShapeDtypeStruct((B, S, D), out_dtype),
        grid_spec=pltpu.PrefetchScalarGridSpec(
            num_scalar_prefetch=0,
            grid=(B // bt, S // tq, S // tk),
            in_specs=[q_spec, kv_spec, kv_spec,
                      pl.BlockSpec((D, D), lambda b, qi, ki: (0, 0)),
                      pl.BlockSpec((1, D), lambda b, qi, ki: (0, 0))],
            out_specs=pl.BlockSpec((bt, tq, D), lambda b, qi, ki: (b, qi, 0)),
            scratch_shapes=[pltpu.VMEM((bt, H, tq, 1), f32),     # running max
                            pltpu.VMEM((bt, H, tq, 1), f32),     # running denom
                            pltpu.VMEM((bt, H, tq, d_k), f32)],  # ctx accumulator
        ),
        compiler_params=pltpu.CompilerParams(
            dimension_semantics=("parallel", "parallel", "arbitrary"),
            vmem_limit_bytes=vmem_limit),
    )(fq, fk, fv, wo_c, bo2)
    return out


# ---------------------------------------------------------------------------
# Pure-JAX reference mirroring the PyTorch forward (eval mode).
# ---------------------------------------------------------------------------
def reference_mha(q, k, v, params, num_heads):
    wq, bq, wk, bk, wv, bv, wo, bo = params
    B, S, D = q.shape
    d_k = D // num_heads

    fq = q @ wq + bq
    fk = k @ wk + bk
    fv = v @ wv + bv

    def split(x):  # (B, S, D) -> (B, h, S, d_k)
        return x.reshape(B, S, num_heads, d_k).transpose(0, 2, 1, 3)

    qh, kh, vh = split(fq), split(fk), split(fv)
    scores = jnp.einsum('bhqd,bhkd->bhqk', qh, kh) / float(d_k) ** 0.5
    attn = jax.nn.softmax(scores, axis=-1)
    ctx = jnp.einsum('bhqk,bhkd->bhqd', attn, vh)
    ctx = ctx.transpose(0, 2, 1, 3).reshape(B, S, D)
    return ctx @ wo + bo


if __name__ == "__main__":
    # Small shapes consistent with the module: batch=2, seq=8, hidden=32, heads=4.
    B, S, D, H = 2, 8, 32, 4

    key = jax.random.PRNGKey(0)
    keys = jax.random.split(key, 12)

    q = jax.random.normal(keys[0], (B, S, D), dtype=jnp.float32)
    k = jax.random.normal(keys[1], (B, S, D), dtype=jnp.float32)
    v = jax.random.normal(keys[2], (B, S, D), dtype=jnp.float32)

    # Deterministic parameter init (shapes match nn.Linear(d_model, d_model),
    # stored transposed so y = x @ W + b).
    scale = 1.0 / (D ** 0.5)
    wq = jax.random.uniform(keys[3], (D, D), jnp.float32, -scale, scale)
    bq = jax.random.uniform(keys[4], (D,), jnp.float32, -scale, scale)
    wk = jax.random.uniform(keys[5], (D, D), jnp.float32, -scale, scale)
    bk = jax.random.uniform(keys[6], (D,), jnp.float32, -scale, scale)
    wv = jax.random.uniform(keys[7], (D, D), jnp.float32, -scale, scale)
    bv = jax.random.uniform(keys[8], (D,), jnp.float32, -scale, scale)
    wo = jax.random.uniform(keys[9], (D, D), jnp.float32, -scale, scale)
    bo = jax.random.uniform(keys[10], (D,), jnp.float32, -scale, scale)
    params = (wq, bq, wk, bk, wv, bv, wo, bo)

    # Cross-attention path (distinct q/k/v -> stacked-weight projection kernel).
    out = jax.block_until_ready(multi_headed_attention(q, k, v, params, num_heads=H))
    ref = jax.block_until_ready(reference_mha(q, k, v, params, num_heads=H))
    assert out.shape == (B, S, D)
    # 5e-3 slack is solely headroom for the EUP approximate reciprocal used in
    # the softmax normalization; all other math is f32 with f32 accumulation.
    assert jnp.allclose(out, ref, atol=5e-3, rtol=5e-3), "mismatch vs JAX reference"

    # Self-attention fast path (q is k is v -> fused (D, 3D) single-GEMM projection).
    out_sa = jax.block_until_ready(multi_headed_attention(q, q, q, params, num_heads=H))
    ref_sa = jax.block_until_ready(reference_mha(q, q, q, params, num_heads=H))
    assert jnp.allclose(out_sa, ref_sa, atol=5e-3, rtol=5e-3), "self-attn mismatch"

    print("KERNEL_OK")
</pallas_src>

<mosaic_0001>
module attributes {stable_mosaic.version = 11 : i64} {
  func.func @_qkv_proj_kernel(%arg0: i32, %arg1: i32, %arg2: memref<1x8x32xf32, #tpu.memory_space<vmem>>, %arg3: memref<1x8x32xf32, #tpu.memory_space<vmem>>, %arg4: memref<1x8x32xf32, #tpu.memory_space<vmem>>, %arg5: memref<3x32x32xf32, #tpu.memory_space<vmem>>, %arg6: memref<3x1x32xf32, #tpu.memory_space<vmem>>, %arg7: memref<1x4x8x8xf32, #tpu.memory_space<vmem>>, %arg8: memref<1x4x8x8xf32, #tpu.memory_space<vmem>>, %arg9: memref<1x4x8x8xf32, #tpu.memory_space<vmem>>) attributes {dimension_semantics = [#tpu.dimension_semantics<parallel>, #tpu.dimension_semantics<parallel>], iteration_bounds = array<i64: 2, 1>, scalar_prefetch = 0 : i64, scratch_operands = 0 : i64, tpu.core_type = #tpu.core_type<tc>, window_params = [{transform_indices = @transform_0, window_bounds = array<i64: 1, 8, 32>}, {transform_indices = @transform_1, window_bounds = array<i64: 1, 8, 32>}, {transform_indices = @transform_2, window_bounds = array<i64: 1, 8, 32>}, {pipeline_mode = #tpu.pipeline_mode<synchronous>, transform_indices = @transform_3, window_bounds = array<i64: 3, 32, 32>}, {pipeline_mode = #tpu.pipeline_mode<synchronous>, transform_indices = @transform_4, window_bounds = array<i64: 3, 1, 32>}, {transform_indices = @transform_5, window_bounds = array<i64: 1, 4, 8, 8>}, {transform_indices = @transform_6, window_bounds = array<i64: 1, 4, 8, 8>}, {transform_indices = @transform_7, window_bounds = array<i64: 1, 4, 8, 8>}]} {
    %c0 = arith.constant 0 : index
    %c0_0 = arith.constant 0 : index
    %c0_1 = arith.constant 0 : index
    %0 = vector.load %arg2[%c0, %c0_0, %c0_1] : memref<1x8x32xf32, #tpu.memory_space<vmem>>, vector<1x8x32xf32>
    %1 = vector.shape_cast %0 : vector<1x8x32xf32> to vector<8x32xf32>
    %c0_2 = arith.constant 0 : index
    %c0_3 = arith.constant 0 : index
    %c0_4 = arith.constant 0 : index
    %2 = vector.load %arg5[%c0_2, %c0_3, %c0_4] : memref<3x32x32xf32, #tpu.memory_space<vmem>>, vector<1x32x32xf32>
    %3 = vector.shape_cast %2 : vector<1x32x32xf32> to vector<32x32xf32>
    %cst = arith.constant dense<0.000000e+00> : vector<8x32xf32>
    %4 = tpu.matmul %1, %3, %cst {dimension_numbers = #tpu.dot_dimension_numbers<[1], [0], [0], [1], [0, 0, 1, 1], [], []>} : vector<8x32xf32>, vector<32x32xf32>, vector<8x32xf32> -> vector<8x32xf32>
    %c0_5 = arith.constant 0 : index
    %c0_6 = arith.constant 0 : index
    %c0_7 = arith.constant 0 : index
    %5 = vector.load %arg6[%c0_5, %c0_6, %c0_7] : memref<3x1x32xf32, #tpu.memory_space<vmem>>, vector<1x1x32xf32>
    %6 = vector.shape_cast %5 : vector<1x1x32xf32> to vector<1x32xf32>
    %7 = vector.broadcast %6 : vector<1x32xf32> to vector<8x32xf32>
    %8 = arith.addf %4, %7 : vector<8x32xf32>
    %9 = vector.shape_cast %8 : vector<8x32xf32> to vector<1x8x4x8xf32>
    %10 = tpu.transpose %9, [0, 2, 1, 3] : vector<1x8x4x8xf32> -> vector<1x4x8x8xf32>
    %c0_8 = arith.constant 0 : index
    %c0_9 = arith.constant 0 : index
    %c0_10 = arith.constant 0 : index
    %c0_11 = arith.constant 0 : index
    %11 = vector.load %arg7[%c0_8, %c0_9, %c0_10, %c0_11] : memref<1x4x8x8xf32, #tpu.memory_space<vmem>>, vector<1x4x8x8xf32>
    tpu.vector_store %arg7[%c0_8, %c0_9, %c0_10, %c0_11], %10 {strides = array<i32>} : memref<1x4x8x8xf32, #tpu.memory_space<vmem>>, vector<1x4x8x8xf32>,
    %c0_12 = arith.constant 0 : index
    %c0_13 = arith.constant 0 : index
    %c0_14 = arith.constant 0 : index
    %12 = vector.load %arg3[%c0_12, %c0_13, %c0_14] : memref<1x8x32xf32, #tpu.memory_space<vmem>>, vector<1x8x32xf32>
    %13 = vector.shape_cast %12 : vector<1x8x32xf32> to vector<8x32xf32>
    %c1 = arith.constant 1 : index
    %c0_15 = arith.constant 0 : index
    %c0_16 = arith.constant 0 : index
    %14 = vector.load %arg5[%c1, %c0_15, %c0_16] : memref<3x32x32xf32, #tpu.memory_space<vmem>>, vector<1x32x32xf32>
    %15 = vector.shape_cast %14 : vector<1x32x32xf32> to vector<32x32xf32>
    %cst_17 = arith.constant dense<0.000000e+00> : vector<8x32xf32>
    %16 = tpu.matmul %13, %15, %cst_17 {dimension_numbers = #tpu.dot_dimension_numbers<[1], [0], [0], [1], [0, 0, 1, 1], [], []>} : vector<8x32xf32>, vector<32x32xf32>, vector<8x32xf32> -> vector<8x32xf32>
    %c1_18 = arith.constant 1 : index
    %c0_19 = arith.constant 0 : index
    %c0_20 = arith.constant 0 : index
    %17 = vector.load %arg6[%c1_18, %c0_19, %c0_20] : memref<3x1x32xf32, #tpu.memory_space<vmem>>, vector<1x1x32xf32>
    %18 = vector.shape_cast %17 : vector<1x1x32xf32> to vector<1x32xf32>
    %19 = vector.broadcast %18 : vector<1x32xf32> to vector<8x32xf32>
    %20 = arith.addf %16, %19 : vector<8x32xf32>
    %21 = vector.shape_cast %20 : vector<8x32xf32> to vector<1x8x4x8xf32>
    %22 = tpu.transpose %21, [0, 2, 1, 3] : vector<1x8x4x8xf32> -> vector<1x4x8x8xf32>
    %c0_21 = arith.constant 0 : index
    %c0_22 = arith.constant 0 : index
    %c0_23 = arith.constant 0 : index
    %c0_24 = arith.constant 0 : index
    %23 = vector.load %arg8[%c0_21, %c0_22, %c0_23, %c0_24] : memref<1x4x8x8xf32, #tpu.memory_space<vmem>>, vector<1x4x8x8xf32>
    tpu.vector_store %arg8[%c0_21, %c0_22, %c0_23, %c0_24], %22 {strides = array<i32>} : memref<1x4x8x8xf32, #tpu.memory_space<vmem>>, vector<1x4x8x8xf32>,
    %c0_25 = arith.constant 0 : index
    %c0_26 = arith.constant 0 : index
    %c0_27 = arith.constant 0 : index
    %24 = vector.load %arg4[%c0_25, %c0_26, %c0_27] : memref<1x8x32xf32, #tpu.memory_space<vmem>>, vector<1x8x32xf32>
    %25 = vector.shape_cast %24 : vector<1x8x32xf32> to vector<8x32xf32>
    %c2 = arith.constant 2 : index
    %c0_28 = arith.constant 0 : index
    %c0_29 = arith.constant 0 : index
    %26 = vector.load %arg5[%c2, %c0_28, %c0_29] : memref<3x32x32xf32, #tpu.memory_space<vmem>>, vector<1x32x32xf32>
    %27 = vector.shape_cast %26 : vector<1x32x32xf32> to vector<32x32xf32>
    %cst_30 = arith.constant dense<0.000000e+00> : vector<8x32xf32>
    %28 = tpu.matmul %25, %27, %cst_30 {dimension_numbers = #tpu.dot_dimension_numbers<[1], [0], [0], [1], [0, 0, 1, 1], [], []>} : vector<8x32xf32>, vector<32x32xf32>, vector<8x32xf32> -> vector<8x32xf32>
    %c2_31 = arith.constant 2 : index
    %c0_32 = arith.constant 0 : index
    %c0_33 = arith.constant 0 : index
    %29 = vector.load %arg6[%c2_31, %c0_32, %c0_33] : memref<3x1x32xf32, #tpu.memory_space<vmem>>, vector<1x1x32xf32>
    %30 = vector.shape_cast %29 : vector<1x1x32xf32> to vector<1x32xf32>
    %31 = vector.broadcast %30 : vector<1x32xf32> to vector<8x32xf32>
    %32 = arith.addf %28, %31 : vector<8x32xf32>
    %33 = vector.shape_cast %32 : vector<8x32xf32> to vector<1x8x4x8xf32>
    %34 = tpu.transpose %33, [0, 2, 1, 3] : vector<1x8x4x8xf32> -> vector<1x4x8x8xf32>
    %c0_34 = arith.constant 0 : index
    %c0_35 = arith.constant 0 : index
    %c0_36 = arith.constant 0 : index
    %c0_37 = arith.constant 0 : index
    %35 = vector.load %arg9[%c0_34, %c0_35, %c0_36, %c0_37] : memref<1x4x8x8xf32, #tpu.memory_space<vmem>>, vector<1x4x8x8xf32>
    tpu.vector_store %arg9[%c0_34, %c0_35, %c0_36, %c0_37], %34 {strides = array<i32>} : memref<1x4x8x8xf32, #tpu.memory_space<vmem>>, vector<1x4x8x8xf32>,
    return
  }
  func.func @transform_0(%arg0: i32, %arg1: i32) -> (i32, i32, i32) {
    %c0_i32 = arith.constant 0 : i32
    %c0_i32_0 = arith.constant 0 : i32
    return %arg0, %arg1, %c0_i32 : i32, i32, i32
  }
  func.func @transform_1(%arg0: i32, %arg1: i32) -> (i32, i32, i32) {
    %c0_i32 = arith.constant 0 : i32
    %c0_i32_0 = arith.constant 0 : i32
    return %arg0, %arg1, %c0_i32 : i32, i32, i32
  }
  func.func @transform_2(%arg0: i32, %arg1: i32) -> (i32, i32, i32) {
    %c0_i32 = arith.constant 0 : i32
    %c0_i32_0 = arith.constant 0 : i32
    return %arg0, %arg1, %c0_i32 : i32, i32, i32
  }
  func.func @transform_3(%arg0: i32, %arg1: i32) -> (i32, i32, i32) {
    %c0_i32 = arith.constant 0 : i32
    %c0_i32_0 = arith.constant 0 : i32
    %c0_i32_1 = arith.constant 0 : i32
    %c0_i32_2 = arith.constant 0 : i32
    return %c0_i32, %c0_i32_0, %c0_i32_1 : i32, i32, i32
  }
  func.func @transform_4(%arg0: i32, %arg1: i32) -> (i32, i32, i32) {
    %c0_i32 = arith.constant 0 : i32
    %c0_i32_0 = arith.constant 0 : i32
    %c0_i32_1 = arith.constant 0 : i32
    %c0_i32_2 = arith.constant 0 : i32
    return %c0_i32, %c0_i32_0, %c0_i32_1 : i32, i32, i32
  }
  func.func @transform_5(%arg0: i32, %arg1: i32) -> (i32, i32, i32, i32) {
    %c0_i32 = arith.constant 0 : i32
    %c0_i32_0 = arith.constant 0 : i32
    %c0_i32_1 = arith.constant 0 : i32
    return %arg0, %c0_i32, %arg1, %c0_i32_0 : i32, i32, i32, i32
  }
  func.func @transform_6(%arg0: i32, %arg1: i32) -> (i32, i32, i32, i32) {
    %c0_i32 = arith.constant 0 : i32
    %c0_i32_0 = arith.constant 0 : i32
    %c0_i32_1 = arith.constant 0 : i32
    return %arg0, %c0_i32, %arg1, %c0_i32_0 : i32, i32, i32, i32
  }
  func.func @transform_7(%arg0: i32, %arg1: i32) -> (i32, i32, i32, i32) {
    %c0_i32 = arith.constant 0 : i32
    %c0_i32_0 = arith.constant 0 : i32
    %c0_i32_1 = arith.constant 0 : i32
    return %arg0, %c0_i32, %arg1, %c0_i32_0 : i32, i32, i32, i32
  }
}

</mosaic_0001>

<llo_original>
// kernel: tpu_custom_call.1
$region0: #{tpu_custom_call.1}
  #allocation0 [shape = 'u32[]', space=smem, size = 0x4, offset = 0x4, fixed_abs, tag = 'smem constant byte address 0x4 - core index']
  #allocation1 [shape = 'u32[72,128]{1,0:T(1,128)}', space=vmem, size = 0x9000, scoped, tag = 'internal scratch']
  %s0 = inlined_call_operand.hbm [shape: f32[2,8,32], index: 0, kind: input, shape index: {}]
  %s1 = inlined_call_operand.hbm [shape: f32[2,8,32], index: 1, kind: input, shape index: {}]
  %s2 = inlined_call_operand.hbm [shape: f32[2,8,32], index: 2, kind: input, shape index: {}]
  %s3 = inlined_call_operand.hbm [shape: f32[3,32,32], index: 3, kind: input, shape index: {}]
  %s4 = inlined_call_operand.vmem [shape: f32[3,1,32], index: 4, kind: input, shape index: {}]
  %s5 = inlined_call_operand.hbm [shape: f32[2,4,8,8], index: 5, kind: output, shape index: {0}]
  %s6 = inlined_call_operand.hbm [shape: f32[2,4,8,8], index: 6, kind: output, shape index: {1}]
  %s7 = inlined_call_operand.hbm [shape: f32[2,4,8,8], index: 7, kind: output, shape index: {2}]
  %8 = xla_tuple %s5, %s6, %s7
  %s9 = sld [smem:[#allocation0]]
  $region85: #{tpu_custom_call.1} parent=0
    _
  %s11 = ssub.s32 1, %s9
  %s12 = scalar_select 0, %s11, %s9
  $region1: #{tpu_custom_call.1} parent=0
    #allocation2 [shape = 'u8[8192]{0}', space=vmem, size = 0x2000, scoped, tag = 'input window, operand 0']
    #allocation3 [shape = 's32[2]{0}', space=sflag, size = 0x8, scoped, tag = 'scoped memory for tpu_custom_call.1']
    #allocation4 [shape = 's32[2]{0}', space=sflag, size = 0x8, scoped, tag = 'scoped memory for tpu_custom_call.1']
    #allocation5 [shape = 'u8[8192]{0}', space=vmem, size = 0x2000, scoped, tag = 'input window, operand 1']
    #allocation6 [shape = 's32[2]{0}', space=sflag, size = 0x8, scoped, tag = 'scoped memory for tpu_custom_call.1']
    #allocation7 [shape = 'u8[8192]{0}', space=vmem, size = 0x2000, scoped, tag = 'input window, operand 2']
    #allocation8 [shape = 'u8[49152]{0}', space=vmem, size = 0xc000, scoped, tag = 'input window, operand 3, single buffered']
    #allocation9 [shape = 's32[1]{0}', space=sflag, size = 0x4, scoped, tag = 'scoped memory for tpu_custom_call.1']
    #allocation10 [shape = 'u8[32768]{0}', space=vmem, size = 0x8000, scoped, tag = 'output window, operand 0']
    #allocation11 [shape = 'u8[32768]{0}', space=vmem, size = 0x8000, scoped, tag = 'output window, operand 1']
    #allocation12 [shape = 's32[2]{0}', space=sflag, size = 0x8, scoped, tag = 'scoped memory for tpu_custom_call.1']
    #allocation13 [shape = 'u8[32768]{0}', space=vmem, size = 0x8000, scoped, tag = 'output window, operand 2']
    %13 = vsyncpa [#allocation3], 0
    %s14 = scalar_lea.sflag [#allocation3], 1
    %15 = vsyncpa %s14, 0
    %16 = vsyncpa [#allocation6], 0
    %s17 = scalar_lea.sflag [#allocation6], 1
    %18 = vsyncpa %s17, 0
    %19 = vsyncpa [#allocation9], 0
    %20 = vsyncpa [#allocation4], 0
    %s21 = scalar_lea.sflag [#allocation4], 1
    %22 = vsyncpa %s21, 0
    %23 = vsyncpa [#allocation12], 0
    %s24 = scalar_lea.sflag [#allocation12], 1
    %25 = vsyncpa %s24, 0
    loop: start=0, step=1, limit=4
    $region2: #{tpu_custom_call.1} parent=1 // loop_pre_header
      _
    $region3: #{tpu_custom_call.1} parent=1 // loop_header
      %s27 = sphi 0, %s31
      %p28 = scmp.ge.s32.totalorder %s27, 4
      %s34 = sphi 0, %s46
      %s35 = sphi 0, %s42
      %s36 = sphi 0, %s34
      %s37 = sphi 0, %s35
      %s38 = sphi 0, %s36
      %s39 = sphi 0, %s37
      %s51 = sphi 0, %s53
      %s54 = sphi 0, %s51
      %s55 = sphi 0, %s54
      %s71 = sphi 0, %s55
      %s79 = sphi 0, %s81
      %s82 = sphi 0, %s79
      %s83 = sphi 0, %s82
      %s99 = sphi 0, %s83
      %s107 = sphi 0, %s109
      %s110 = sphi 0, %s107
      %s111 = sphi 0, %s110
      %s127 = sphi 0, %s111
      %s131 = sphi 0, %s131
      %s133 = sphi 0, %s131
      %s134 = sphi 0, %s133
      %s148 = sphi 0, %s134
      %s152 = sphi 0, %s152
      %s154 = sphi 0, %s152
      %s155 = sphi 0, %s154
      %s169 = sphi 0, %s155
      %s177 = sphi 0, %s179
      %s180 = sphi 0, %s177
      %s181 = sphi 0, %s180
      %s197 = sphi 0, %s181
      %s205 = sphi 0, %s207
      %s208 = sphi 0, %s205
      %s209 = sphi 0, %s208
      %s225 = sphi 0, %s209
      %s233 = sphi 0, %s235
      %s236 = sphi 0, %s233
      %s237 = sphi 0, %s236
      %s253 = sphi 0, %s237
    $region4: #{tpu_custom_call.1} parent=1 // loop_header_branch
      %30 = sbr.rel (%p28) target = $region8
    $region5: #{tpu_custom_call.1} parent=1 // loop_body
      %s32 = ssub.s32 %s27, 1
      %s33 = ssub.s32 %s27, 2
      %s40 = sadd.s32 1, %s35
      %p41 = scmp.ge.s32.totalorder %s40, 1
      %s42 = scalar_select %p41, 0, %s40
      %s43 = sadd.s32 1, %s34
      %s44 = scalar_select %p41, %s43, %s34
      %p45 = scmp.ge.s32.totalorder %s44, 2
      %s46 = scalar_select %p45, 0, %s44
      %s47 = ssub.s32 %s34, %s46
      %s48 = ssub.s32 %s35, %s42
      %s49 = sor.u32 %s47, %s48
      %p50 = scmp.eq.s32.totalorder %s49, 0
      %s52 = sadd.s32 %s51, 1
      %s53 = scalar_select %p50, %s51, %s52
      %p56 = pneg %p50
      %p57 = scmp.eq.s32.totalorder %s27, 1
      %p58 = por %p56, %p57
      %p59 = scmp.ne.s32.totalorder %s51, %s54
      %p60 = scmp.eq.s32.totalorder %s27, 0
      %p61 = por %p59, %p60
      %p62 = scmp.ne.s32.totalorder %s51, %s54
      %p63 = scmp.eq.s32.totalorder %s32, 1
      %p64 = por %p62, %p63
      %p65 = scmp.ne.s32.totalorder %s54, %s55
      %p66 = scmp.eq.s32.totalorder %s32, 0
      %p67 = por %p65, %p66
      %p68 = scmp.ne.s32.totalorder %s54, %s55
      %p69 = scmp.eq.s32.totalorder %s33, 1
      %p70 = por %p68, %p69
      %p72 = scmp.ne.s32.totalorder %s55, %s71
      %p73 = scmp.eq.s32.totalorder %s33, 0
      %p74 = por %p72, %p73
      %s75 = ssub.s32 %s34, %s46
      %s76 = ssub.s32 %s35, %s42
      %s77 = sor.u32 %s75, %s76
      %p78 = scmp.eq.s32.totalorder %s77, 0
      %s80 = sadd.s32 %s79, 1
      %s81 = scalar_select %p78, %s79, %s80
      %p84 = pneg %p78
      %p85 = scmp.eq.s32.totalorder %s27, 1
      %p86 = por %p84, %p85
      %p87 = scmp.ne.s32.totalorder %s79, %s82
      %p88 = scmp.eq.s32.totalorder %s27, 0
      %p89 = por %p87, %p88
      %p90 = scmp.ne.s32.totalorder %s79, %s82
      %p91 = scmp.eq.s32.totalorder %s32, 1
      %p92 = por %p90, %p91
      %p93 = scmp.ne.s32.totalorder %s82, %s83
      %p94 = scmp.eq.s32.totalorder %s32, 0
      %p95 = por %p93, %p94
      %p96 = scmp.ne.s32.totalorder %s82, %s83
      %p97 = scmp.eq.s32.totalorder %s33, 1
      %p98 = por %p96, %p97
      %p100 = scmp.ne.s32.totalorder %s83, %s99
      %p101 = scmp.eq.s32.totalorder %s33, 0
      %p102 = por %p100, %p101
      %s103 = ssub.s32 %s34, %s46
      %s104 = ssub.s32 %s35, %s42
      %s105 = sor.u32 %s103, %s104
      %p106 = scmp.eq.s32.totalorder %s105, 0
      %s108 = sadd.s32 %s107, 1
      %s109 = scalar_select %p106, %s107, %s108
      %p112 = pneg %p106
      %p113 = scmp.eq.s32.totalorder %s27, 1
      %p114 = por %p112, %p113
      %p115 = scmp.ne.s32.totalorder %s107, %s110
      %p116 = scmp.eq.s32.totalorder %s27, 0
      %p117 = por %p115, %p116
      %p118 = scmp.ne.s32.totalorder %s107, %s110
      %p119 = scmp.eq.s32.totalorder %s32, 1
      %p120 = por %p118, %p119
      %p121 = scmp.ne.s32.totalorder %s110, %s111
      %p122 = scmp.eq.s32.totalorder %s32, 0
      %p123 = por %p121, %p122
      %p124 = scmp.ne.s32.totalorder %s110, %s111
      %p125 = scmp.eq.s32.totalorder %s33, 1
      %p126 = por %p124, %p125
      %p128 = scmp.ne.s32.totalorder %s111, %s127
      %p129 = scmp.eq.s32.totalorder %s33, 0
      %p130 = por %p128, %p129
      %s132 = sadd.s32 %s131, 1
      %p135 = scmp.eq.s32.totalorder %s27, 1
      %p136 = scmp.ne.s32.totalorder %s131, %s133
      %p137 = scmp.eq.s32.totalorder %s27, 0
      %p138 = por %p136, %p137
      %p139 = scmp.ne.s32.totalorder %s131, %s133
      %p140 = scmp.eq.s32.totalorder %s32, 1
      %p141 = por %p139, %p140
      %p142 = scmp.ne.s32.totalorder %s133, %s134
      %p143 = scmp.eq.s32.totalorder %s32, 0
      %p144 = por %p142, %p143
      %p145 = scmp.ne.s32.totalorder %s133, %s134
      %p146 = scmp.eq.s32.totalorder %s33, 1
      %p147 = por %p145, %p146
      %p149 = scmp.ne.s32.totalorder %s134, %s148
      %p150 = scmp.eq.s32.totalorder %s33, 0
      %p151 = por %p149, %p150
      %s153 = sadd.s32 %s152, 1
      %p156 = scmp.eq.s32.totalorder %s27, 1
      %p157 = scmp.ne.s32.totalorder %s152, %s154
      %p158 = scmp.eq.s32.totalorder %s27, 0
      %p159 = por %p157, %p158
      %p160 = scmp.ne.s32.totalorder %s152, %s154
      %p161 = scmp.eq.s32.totalorder %s32, 1
      %p162 = por %p160, %p161
      %p163 = scmp.ne.s32.totalorder %s154, %s155
      %p164 = scmp.eq.s32.totalorder %s32, 0
      %p165 = por %p163, %p164
      %p166 = scmp.ne.s32.totalorder %s154, %s155
      %p167 = scmp.eq.s32.totalorder %s33, 1
      %p168 = por %p166, %p167
      %p170 = scmp.ne.s32.totalorder %s155, %s169
      %p171 = scmp.eq.s32.totalorder %s33, 0
      %p172 = por %p170, %p171
      %s173 = ssub.s32 %s34, %s46
      %s174 = ssub.s32 %s35, %s42
      %s175 = sor.u32 %s173, %s174
      %p176 = scmp.eq.s32.totalorder %s175, 0
      %s178 = sadd.s32 %s177, 1
      %s179 = scalar_select %p176, %s177, %s178
      %p182 = pneg %p176
      %p183 = scmp.eq.s32.totalorder %s27, 1
      %p184 = por %p182, %p183
      %p185 = scmp.ne.s32.totalorder %s177, %s180
      %p186 = scmp.eq.s32.totalorder %s27, 0
      %p187 = por %p185, %p186
      %p188 = scmp.ne.s32.totalorder %s177, %s180
      %p189 = scmp.eq.s32.totalorder %s32, 1
      %p190 = por %p188, %p189
      %p191 = scmp.ne.s32.totalorder %s180, %s181
      %p192 = scmp.eq.s32.totalorder %s32, 0
      %p193 = por %p191, %p192
      %p194 = scmp.ne.s32.totalorder %s180, %s181
      %p195 = scmp.eq.s32.totalorder %s33, 1
      %p196 = por %p194, %p195
      %p198 = scmp.ne.s32.totalorder %s181, %s197
      %p199 = scmp.eq.s32.totalorder %s33, 0
      %p200 = por %p198, %p199
      %s201 = ssub.s32 %s34, %s46
      %s202 = ssub.s32 %s35, %s42
      %s203 = sor.u32 %s201, %s202
      %p204 = scmp.eq.s32.totalorder %s203, 0
      %s206 = sadd.s32 %s205, 1
      %s207 = scalar_select %p204, %s205, %s206
      %p210 = pneg %p204
      %p211 = scmp.eq.s32.totalorder %s27, 1
      %p212 = por %p210, %p211
      %p213 = scmp.ne.s32.totalorder %s205, %s208
      %p214 = scmp.eq.s32.totalorder %s27, 0
      %p215 = por %p213, %p214
      %p216 = scmp.ne.s32.totalorder %s205, %s208
      %p217 = scmp.eq.s32.totalorder %s32, 1
      %p218 = por %p216, %p217
      %p219 = scmp.ne.s32.totalorder %s208, %s209
      %p220 = scmp.eq.s32.totalorder %s32, 0
      %p221 = por %p219, %p220
      %p222 = scmp.ne.s32.totalorder %s208, %s209
      %p223 = scmp.eq.s32.totalorder %s33, 1
      %p224 = por %p222, %p223
      %p226 = scmp.ne.s32.totalorder %s209, %s225
      %p227 = scmp.eq.s32.totalorder %s33, 0
      %p228 = por %p226, %p227
      %s229 = ssub.s32 %s34, %s46
      %s230 = ssub.s32 %s35, %s42
      %s231 = sor.u32 %s229, %s230
      %p232 = scmp.eq.s32.totalorder %s231, 0
      %s234 = sadd.s32 %s233, 1
      %s235 = scalar_select %p232, %s233, %s234
      %p238 = pneg %p232
      %p239 = scmp.eq.s32.totalorder %s27, 1
      %p240 = por %p238, %p239
      %p241 = scmp.ne.s32.totalorder %s233, %s236
      %p242 = scmp.eq.s32.totalorder %s27, 0
      %p243 = por %p241, %p242
      %p244 = scmp.ne.s32.totalorder %s233, %s236
      %p245 = scmp.eq.s32.totalorder %s32, 1
      %p246 = por %p244, %p245
      %p247 = scmp.ne.s32.totalorder %s236, %s237
      %p248 = scmp.eq.s32.totalorder %s32, 0
      %p249 = por %p247, %p248
      %p250 = scmp.ne.s32.totalorder %s236, %s237
      %p251 = scmp.eq.s32.totalorder %s33, 1
      %p252 = por %p250, %p251
      %p254 = scmp.ne.s32.totalorder %s237, %s253
      %p255 = scmp.eq.s32.totalorder %s33, 0
      %p256 = por %p254, %p255
      %p257 = scmp.le.s32.totalorder 1, %s27
      %p258 = scmp.lt.s32.totalorder %s27, 3
      %p259 = pnand %p257, %p258
      %p260 = pneg %p259
      // Predicated region
      $region9: #{tpu_custom_call.1} parent=5 // pred_check
        _
      $region10: #{tpu_custom_call.1} parent=5 // pred_check_branch
        %262 = sbr.rel (%p259) target = $region12
      $region11: #{tpu_custom_call.1} parent=5 // pred_region
        %s263 = ssub.s32 %s27, 1
        // Predicated region
        $region13: #{tpu_custom_call.1} parent=11 // pred_check
          %p264 = pneg %p144
        $region14: #{tpu_custom_call.1} parent=11 // pred_check_branch
          %266 = sbr.rel (%p264) target = $region16
        $region15: #{tpu_custom_call.1} parent=11 // pred_region
          %268 = vsyncadd [#allocation9], 0
          %s269 = sshll.u32 %s3, 4
          %s270 = int_to_ptr.hbm [resolvable:$true] %s269
          %s271 = sshll.u32 [#allocation8], 4
          %s272 = int_to_ptr.vmem [resolvable:$true] %s271
          %277 = dma.hbm_to_vmem [thread:$0]  %s270, 1536, %s272, [#allocation9], 128, 128, 8
        $region16: #{tpu_custom_call.1} parent=11 // pred_fallthru
          _
        // Predicated region
        $region17: #{tpu_custom_call.1} parent=11 // pred_check
          %p278 = pneg %p165
        $region18: #{tpu_custom_call.1} parent=11 // pred_check_branch
          %280 = sbr.rel (%p278) target = $region20
        $region19: #{tpu_custom_call.1} parent=11 // pred_region
          _
        $region20: #{tpu_custom_call.1} parent=11 // pred_fallthru
          _
      $region12: #{tpu_custom_call.1} parent=5 // pred_fallthru
        _
      %p281 = scmp.lt.s32.totalorder %s27, 2
      // Predicated region
      $region21: #{tpu_custom_call.1} parent=5 // pred_check
        %p282 = pneg %p281
      $region22: #{tpu_custom_call.1} parent=5 // pred_check_branch
        %284 = sbr.rel (%p282) target = $region24
      $region23: #{tpu_custom_call.1} parent=5 // pred_region
        // Predicated region
        $region25: #{tpu_custom_call.1} parent=23 // pred_check
          %p285 = pneg %p61
        $region26: #{tpu_custom_call.1} parent=23 // pred_check_branch
          %287 = sbr.rel (%p285) target = $region28
        $region27: #{tpu_custom_call.1} parent=23 // pred_region
          %s288 = sand.u32 %s51, 1
          %s289 = scalar_lea.sflag [#allocation3], %s288
          %s290 = sand.u32 %s51, 1
          %s291 = smul.addr %s290, 8
          %s292 = scalar_lea.vmem [#allocation2], %s291
          %294 = vsyncadd %s289, 0
          %s295 = sadd.s32 %s35, %s34
          %s296 = smul.addr %s295, 8
          %s297 = scalar_lea.hbm %s0, %s296
          %s299 = sshll.u32 %s297, 4
          %s300 = int_to_ptr.hbm [resolvable:$true] %s299
          %s301 = sshll.u32 %s292, 4
          %s302 = int_to_ptr.vmem [resolvable:$true] %s301
          %304 = dma.hbm_to_vmem [thread:$0]  %s300, 128, %s302, %s289
        $region28: #{tpu_custom_call.1} parent=23 // pred_fallthru
          _
        // Predicated region
        $region29: #{tpu_custom_call.1} parent=23 // pred_check
          %p305 = pneg %p89
        $region30: #{tpu_custom_call.1} parent=23 // pred_check_branch
          %307 = sbr.rel (%p305) target = $region32
        $region31: #{tpu_custom_call.1} parent=23 // pred_region
          %s308 = sand.u32 %s27, 1
          %s309 = scalar_lea.sflag [#allocation6], %s308
          %s310 = sand.u32 %s79, 1
          %s311 = smul.addr %s310, 8
          %s312 = scalar_lea.vmem [#allocation5], %s311
          %314 = vsyncadd %s309, 0
          %s315 = sadd.s32 %s35, %s34
          %s316 = smul.addr %s315, 8
          %s317 = scalar_lea.hbm %s1, %s316
          %s319 = sshll.u32 %s317, 4
          %s320 = int_to_ptr.hbm [resolvable:$true] %s319
          %s321 = sshll.u32 %s312, 4
          %s322 = int_to_ptr.vmem [resolvable:$true] %s321
          %324 = dma.hbm_to_vmem [thread:$0]  %s320, 128, %s322, %s309
        $region32: #{tpu_custom_call.1} parent=23 // pred_fallthru
          _
        // Predicated region
        $region33: #{tpu_custom_call.1} parent=23 // pred_check
          %p325 = pneg %p117
        $region34: #{tpu_custom_call.1} parent=23 // pred_check_branch
          %327 = sbr.rel (%p325) target = $region36
        $region35: #{tpu_custom_call.1} parent=23 // pred_region
          %s328 = sand.u32 %s27, 1
          %s329 = scalar_lea.sflag [#allocation6], %s328
          %s330 = sand.u32 %s107, 1
          %s331 = smul.addr %s330, 8
          %s332 = scalar_lea.vmem [#allocation7], %s331
          %334 = vsyncadd %s329, 0
          %s335 = sadd.s32 %s35, %s34
          %s336 = smul.addr %s335, 8
          %s337 = scalar_lea.hbm %s2, %s336
          %s339 = sshll.u32 %s337, 4
          %s340 = int_to_ptr.hbm [resolvable:$true] %s339
          %s341 = sshll.u32 %s332, 4
          %s342 = int_to_ptr.vmem [resolvable:$true] %s341
          %344 = dma.hbm_to_vmem [thread:$0]  %s340, 128, %s342, %s329
        $region36: #{tpu_custom_call.1} parent=23 // pred_fallthru
          _
      $region24: #{tpu_custom_call.1} parent=5 // pred_fallthru
        _
      %p345 = scmp.le.s32.totalorder 1, %s27
      %p346 = scmp.lt.s32.totalorder %s27, 3
      %p347 = pnand %p345, %p346
      %p348 = pneg %p347
      // Predicated region
      $region37: #{tpu_custom_call.1} parent=5 // pred_check
        _
      $region38: #{tpu_custom_call.1} parent=5 // pred_check_branch
        %350 = sbr.rel (%p347) target = $region40
      $region39: #{tpu_custom_call.1} parent=5 // pred_region
        %s351 = ssub.s32 %s27, 1
        %s352 = sand.u32 %s54, 1
        %s353 = scalar_lea.sflag [#allocation3], %s352
        %s354 = sand.u32 %s54, 1
        %s355 = smul.addr %s354, 8
        %s356 = scalar_lea.vmem [#allocation2], %s355
        // Predicated region
        $region41: #{tpu_custom_call.1} parent=39 // pred_check
          %p357 = pneg %p67
        $region42: #{tpu_custom_call.1} parent=39 // pred_check_branch
          %359 = sbr.rel (%p357) target = $region44
        $region43: #{tpu_custom_call.1} parent=39 // pred_region
          %361 = dma.done %s353, 128
        $region44: #{tpu_custom_call.1} parent=39 // pred_fallthru
          _
        %s362 = sand.u32 %s32, 1
        %s363 = scalar_lea.sflag [#allocation6], %s362
        %s364 = sand.u32 %s82, 1
        %s365 = smul.addr %s364, 8
        %s366 = scalar_lea.vmem [#allocation5], %s365
        // Predicated region
        $region45: #{tpu_custom_call.1} parent=39 // pred_check
          %p367 = pneg %p95
        $region46: #{tpu_custom_call.1} parent=39 // pred_check_branch
          %369 = sbr.rel (%p367) target = $region48
        $region47: #{tpu_custom_call.1} parent=39 // pred_region
          %371 = dma.done %s363, 128
        $region48: #{tpu_custom_call.1} parent=39 // pred_fallthru
          _
        %s372 = sand.u32 %s32, 1
        %s373 = scalar_lea.sflag [#allocation6], %s372
        %s374 = sand.u32 %s110, 1
        %s375 = smul.addr %s374, 8
        %s376 = scalar_lea.vmem [#allocation7], %s375
        // Predicated region
        $region49: #{tpu_custom_call.1} parent=39 // pred_check
          %p377 = pneg %p123
        $region50: #{tpu_custom_call.1} parent=39 // pred_check_branch
          %379 = sbr.rel (%p377) target = $region52
        $region51: #{tpu_custom_call.1} parent=39 // pred_region
          %381 = dma.done %s373, 128
        $region52: #{tpu_custom_call.1} parent=39 // pred_fallthru
          _
        // Predicated region
        $region53: #{tpu_custom_call.1} parent=39 // pred_check
          %p382 = pneg %p144
        $region54: #{tpu_custom_call.1} parent=39 // pred_check_branch
          %384 = sbr.rel (%p382) target = $region56
        $region55: #{tpu_custom_call.1} parent=39 // pred_region
          %386 = dma.done [#allocation9], 1536
        $region56: #{tpu_custom_call.1} parent=39 // pred_fallthru
          _
        %s387 = sand.u32 %s54, 1
        %s388 = scalar_lea.sflag [#allocation3], %s387
        %s389 = sand.u32 %s54, 1
        %s390 = smul.addr %s389, 8
        %s391 = scalar_lea.vmem [#allocation2], %s390
        %p392 = pneg %p67
        %p393 = pneg %p64
        %s394 = sand.u32 %s32, 1
        %s395 = scalar_lea.sflag [#allocation6], %s394
        %s396 = sand.u32 %s82, 1
        %s397 = smul.addr %s396, 8
        %s398 = scalar_lea.vmem [#allocation5], %s397
        %p399 = pneg %p95
        %p400 = pneg %p92
        %s401 = sand.u32 %s32, 1
        %s402 = scalar_lea.sflag [#allocation6], %s401
        %s403 = sand.u32 %s110, 1
        %s404 = smul.addr %s403, 8
        %s405 = scalar_lea.vmem [#allocation7], %s404
        %p406 = pneg %p123
        %p407 = pneg %p120
        %p408 = pneg %p144
        %p409 = pneg %p141
        %p410 = pneg %p165
        %p411 = pneg %p162
        %p412 = pneg %p193
        %p413 = pneg %p190
        %s414 = sand.u32 %s180, 1
        %s415 = scalar_lea.sflag [#allocation4], %s414
        %s416 = sand.u32 %s180, 1
        %s417 = smul.addr %s416, 32
        %s418 = scalar_lea.vmem [#allocation10], %s417
        %p419 = pneg %p221
        %p420 = pneg %p218
        %s421 = sand.u32 %s32, 1
        %s422 = scalar_lea.sflag [#allocation12], %s421
        %s423 = sand.u32 %s208, 1
        %s424 = smul.addr %s423, 32
        %s425 = scalar_lea.vmem [#allocation11], %s424
        %p426 = pneg %p249
        %p427 = pneg %p246
        %s428 = sand.u32 %s32, 1
        %s429 = scalar_lea.sflag [#allocation12], %s428
        %s430 = sand.u32 %s236, 1
        %s431 = smul.addr %s430, 32
        %s432 = scalar_lea.vmem [#allocation13], %s431
        %v433 = vld [vmem:[%s356] sm:$0xff]
        %v434 = vld [vmem:[#allocation8] sm:$0xff]
        %v435 = vld [vmem:[#allocation8 + $0x8] sm:$0xff]
        %v436 = vld [vmem:[#allocation8 + $0x10] sm:$0xff]
        %v437 = vld [vmem:[#allocation8 + $0x18] sm:$0xff]
        %v438 = vld [vmem:[%s4] sm:$0x1]
        %v440 = vperm.slane %v438, 0
        %vm442 = vcmask 261120
        %v444 = vsel %vm442, %v433, 0
        %446 = vmatpush.msra.mxu0 0.0
        %447 = vmatpush.msra.mxu0 0.0
        %448 = vmatpush.msra.mxu0 0.0
        %449 = vmatpush.msra.mxu0 0.0
        %450 = vmatpush.msra.mxu0 0.0
        %451 = vmatpush.msra.mxu0 0.0
        %452 = vmatpush.msra.mxu0 0.0
        %453 = vmatpush.msra.mxu0 0.0
        %454 = vmatpush.msra.mxu0 0.0
        %455 = vmatpush.msra.mxu0 0.0
        %456 = vmatpush.msra.mxu0 0.0
        %457 = vmatpush.msra.mxu0 0.0
        %458 = vmatpush.msra.mxu0 %v437
        %459 = vmatpush.msra.mxu0 %v436
        %460 = vmatpush.msra.mxu0 %v435
        %461 = vmatpush.msra.mxu0 %v434
        %462 = vmatmul.f32.gmra.mxu0 %v444
        %v463 = vpop.f32.mrf.mxu0
        %v464 = vadd.f32 %v440, %v463
        %465 = vdwg.mxu0
        %467 = vrot.lane.b32.xlu0 %v464, 120
        %v468 = vpop.permute.xlu0 %467
        %470 = vrot.lane.b32.xlu0 %v464, 112
        %v471 = vpop.permute.xlu0 %470
        %473 = vrot.lane.b32.xlu0 %v464, 104
        %v474 = vpop.permute.xlu0 %473
        %v476 = vrot.slane %v471, 4
        %vm477 = vcmask 1047556
        %v478 = vsel %vm477, %v476, %v464
        %v479 = vrot.slane %v464, 4
        %v480 = vsel %vm477, %v471, %v479
        %v482 = vunpack.c.l.s4 1983009808
        %v483 = vunpack.c.0.s8 %v482
        %v484 = vperm.slane %v478, %v483
        %v486 = vunpack.c.l.s4 1983009808
        %v487 = vunpack.c.0.s8 %v486
        %v488 = vperm.slane %v480, %v487
        %v489 = vrot.slane %v474, 4
        %v490 = vsel %vm477, %v489, %v468
        %v491 = vrot.slane %v468, 4
        %v492 = vsel %vm477, %v474, %v491
        %v494 = vunpack.c.l.s4 1983009808
        %v495 = vunpack.c.0.s8 %v494
        %v496 = vperm.slane %v490, %v495
        %v498 = vunpack.c.l.s4 1983009808
        %v499 = vunpack.c.0.s8 %v498
        %v500 = vperm.slane %v492, %v499
        %v501 = vrot.slane %v496, 4
        %v502 = vsel %vm477, %v501, %v484
        %v503 = vrot.slane %v484, 4
        %v504 = vsel %vm477, %v496, %v503
        %v506 = vunpack.c.l.s4 1934713408
        %v507 = vunpack.c.0.s8 %v506
        %v508 = vperm.slane %v502, %v507
        %v510 = vunpack.c.l.s4 1934713408
        %v511 = vunpack.c.0.s8 %v510
        %v512 = vperm.slane %v504, %v511
        %v513 = vrot.slane %v500, 4
        %v514 = vsel %vm477, %v513, %v488
        %v515 = vrot.slane %v488, 4
        %v516 = vsel %vm477, %v500, %v515
        %v518 = vunpack.c.l.s4 1934713408
        %v519 = vunpack.c.0.s8 %v518
        %v520 = vperm.slane %v514, %v519
        %v522 = vunpack.c.l.s4 1934713408
        %v523 = vunpack.c.0.s8 %v522
        %v524 = vperm.slane %v516, %v523
        %v525 = vrot.slane %v508, 4
        %v526 = vsel %vm477, 0.0, %v525
        %v527 = vrot.slane %v512, 4
        %v528 = vsel %vm477, 0.0, %v527
        %v529 = vrot.slane %v520, 4
        %v530 = vsel %vm477, 0.0, %v529
        %v531 = vrot.slane %v524, 4
        %v532 = vsel %vm477, 0.0, %v531
        %v533 = vsel %vm477, %v527, %v508
        %v535 = vunpack.c.l.s4 1983009808
        %v536 = vunpack.c.0.s8 %v535
        %v537 = vperm.slane %v533, %v536
        %v538 = vrot.slane %v528, 4
        %v539 = vsel %vm477, %v538, %v526
        %v541 = vunpack.c.l.s4 1983009808
        %v542 = vunpack.c.0.s8 %v541
        %v543 = vperm.slane %v539, %v542
        %v544 = vsel %vm477, %v531, %v520
        %v546 = vunpack.c.l.s4 1983009808
        %v547 = vunpack.c.0.s8 %v546
        %v548 = vperm.slane %v544, %v547
        %v549 = vrot.slane %v532, 4
        %v550 = vsel %vm477, %v549, %v530
        %v552 = vunpack.c.l.s4 1983009808
        %v553 = vunpack.c.0.s8 %v552
        %v554 = vperm.slane %v550, %v553
        %v555 = vrot.slane %v543, 4
        %v556 = vsel %vm477, %v555, %v537
        %v557 = vrot.slane %v537, 4
        %v558 = vsel %vm477, %v543, %v557
        %v560 = vunpack.c.l.s4 1934713408
        %v561 = vunpack.c.0.s8 %v560
        %v562 = vperm.slane %v556, %v561
        %v564 = vunpack.c.l.s4 1934713408
        %v565 = vunpack.c.0.s8 %v564
        %v566 = vperm.slane %v558, %v565
        %v567 = vrot.slane %v554, 4
        %v568 = vsel %vm477, %v567, %v548
        %v569 = vrot.slane %v548, 4
        %v570 = vsel %vm477, %v554, %v569
        %v572 = vunpack.c.l.s4 1934713408
        %v573 = vunpack.c.0.s8 %v572
        %v574 = vperm.slane %v568, %v573
        %v576 = vunpack.c.l.s4 1934713408
        %v577 = vunpack.c.0.s8 %v576
        %v578 = vperm.slane %v570, %v577
        %v579 = vrot.slane %v574, 4
        %v580 = vsel %vm477, %v579, %v562
        %v581 = vrot.slane %v562, 4
        %v582 = vsel %vm477, %v574, %v581
        %v583 = vrot.slane %v578, 4
        %v584 = vsel %vm477, %v583, %v566
        %v585 = vrot.slane %v566, 4
        %v586 = vsel %vm477, %v578, %v585
        %vm587 = vcmask 64512
        %588 = vst.msk [vmem:[%s418] sm:$0xff] %vm587, %v580
        %589 = vst.msk [vmem:[%s418 + $0x8] sm:$0xff] %vm587, %v582
        %590 = vst.msk [vmem:[%s418 + $0x10] sm:$0xff] %vm587, %v584
        %591 = vst.msk [vmem:[%s418 + $0x18] sm:$0xff] %vm587, %v586
        %v592 = vld [vmem:[%s366] sm:$0xff]
        %s593 = scalar_lea.vmem [#allocation8], 32
        %v594 = vld [vmem:[%s593] sm:$0xff]
        %v595 = vld [vmem:[%s593 + $0x8] sm:$0xff]
        %v596 = vld [vmem:[%s593 + $0x10] sm:$0xff]
        %v597 = vld [vmem:[%s593 + $0x18] sm:$0xff]
        %s598 = scalar_lea.vmem %s4, 1
        %v599 = vld [vmem:[%s598] sm:$0x1]
        %v601 = vperm.slane %v599, 0
        %v604 = vsel %vm442, %v592, 0
        %606 = vmatpush.msra.mxu0 0.0
        %607 = vmatpush.msra.mxu0 0.0
        %608 = vmatpush.msra.mxu0 0.0
        %609 = vmatpush.msra.mxu0 0.0
        %610 = vmatpush.msra.mxu0 0.0
        %611 = vmatpush.msra.mxu0 0.0
        %612 = vmatpush.msra.mxu0 0.0
        %613 = vmatpush.msra.mxu0 0.0
        %614 = vmatpush.msra.mxu0 0.0
        %615 = vmatpush.msra.mxu0 0.0
        %616 = vmatpush.msra.mxu0 0.0
        %617 = vmatpush.msra.mxu0 0.0
        %618 = vmatpush.msra.mxu0 %v597
        %619 = vmatpush.msra.mxu0 %v596
        %620 = vmatpush.msra.mxu0 %v595
        %621 = vmatpush.msra.mxu0 %v594
        %622 = vmatmul.f32.gmra.mxu0 %v604
        %v623 = vpop.f32.mrf.mxu0
        %v624 = vadd.f32 %v601, %v623
        %625 = vdwg.mxu0
        %627 = vrot.lane.b32.xlu0 %v624, 120
        %v628 = vpop.permute.xlu0 %627
        %630 = vrot.lane.b32.xlu0 %v624, 112
        %v631 = vpop.permute.xlu0 %630
        %633 = vrot.lane.b32.xlu0 %v624, 104
        %v634 = vpop.permute.xlu0 %633
        %v636 = vrot.slane %v631, 4
        %v637 = vsel %vm477, %v636, %v624
        %v638 = vrot.slane %v624, 4
        %v639 = vsel %vm477, %v631, %v638
        %v641 = vunpack.c.l.s4 1983009808
        %v642 = vunpack.c.0.s8 %v641
        %v643 = vperm.slane %v637, %v642
        %v645 = vunpack.c.l.s4 1983009808
        %v646 = vunpack.c.0.s8 %v645
        %v647 = vperm.slane %v639, %v646
        %v648 = vrot.slane %v634, 4
        %v649 = vsel %vm477, %v648, %v628
        %v650 = vrot.slane %v628, 4
        %v651 = vsel %vm477, %v634, %v650
        %v653 = vunpack.c.l.s4 1983009808
        %v654 = vunpack.c.0.s8 %v653
        %v655 = vperm.slane %v649, %v654
        %v657 = vunpack.c.l.s4 1983009808
        %v658 = vunpack.c.0.s8 %v657
        %v659 = vperm.slane %v651, %v658
        %v660 = vrot.slane %v655, 4
        %v661 = vsel %vm477, %v660, %v643
        %v662 = vrot.slane %v643, 4
        %v663 = vsel %vm477, %v655, %v662
        %v665 = vunpack.c.l.s4 1934713408
        %v666 = vunpack.c.0.s8 %v665
        %v667 = vperm.slane %v661, %v666
        %v669 = vunpack.c.l.s4 1934713408
        %v670 = vunpack.c.0.s8 %v669
        %v671 = vperm.slane %v663, %v670
        %v672 = vrot.slane %v659, 4
        %v673 = vsel %vm477, %v672, %v647
        %v674 = vrot.slane %v647, 4
        %v675 = vsel %vm477, %v659, %v674
        %v677 = vunpack.c.l.s4 1934713408
        %v678 = vunpack.c.0.s8 %v677
        %v679 = vperm.slane %v673, %v678
        %v681 = vunpack.c.l.s4 1934713408
        %v682 = vunpack.c.0.s8 %v681
        %v683 = vperm.slane %v675, %v682
        %v684 = vrot.slane %v667, 4
        %v685 = vsel %vm477, 0.0, %v684
        %v686 = vrot.slane %v671, 4
        %v687 = vsel %vm477, 0.0, %v686
        %v688 = vrot.slane %v679, 4
        %v689 = vsel %vm477, 0.0, %v688
        %v690 = vrot.slane %v683, 4
        %v691 = vsel %vm477, 0.0, %v690
        %v692 = vsel %vm477, %v686, %v667
        %v694 = vunpack.c.l.s4 1983009808
        %v695 = vunpack.c.0.s8 %v694
        %v696 = vperm.slane %v692, %v695
        %v697 = vrot.slane %v687, 4
        %v698 = vsel %vm477, %v697, %v685
        %v700 = vunpack.c.l.s4 1983009808
        %v701 = vunpack.c.0.s8 %v700
        %v702 = vperm.slane %v698, %v701
        %v703 = vsel %vm477, %v690, %v679
        %v705 = vunpack.c.l.s4 1983009808
        %v706 = vunpack.c.0.s8 %v705
        %v707 = vperm.slane %v703, %v706
        %v708 = vrot.slane %v691, 4
        %v709 = vsel %vm477, %v708, %v689
        %v711 = vunpack.c.l.s4 1983009808
        %v712 = vunpack.c.0.s8 %v711
        %v713 = vperm.slane %v709, %v712
        %v714 = vrot.slane %v702, 4
        %v715 = vsel %vm477, %v714, %v696
        %v716 = vrot.slane %v696, 4
        %v717 = vsel %vm477, %v702, %v716
        %v719 = vunpack.c.l.s4 1934713408
        %v720 = vunpack.c.0.s8 %v719
        %v721 = vperm.slane %v715, %v720
        %v723 = vunpack.c.l.s4 1934713408
        %v724 = vunpack.c.0.s8 %v723
        %v725 = vperm.slane %v717, %v724
        %v726 = vrot.slane %v713, 4
        %v727 = vsel %vm477, %v726, %v707
        %v728 = vrot.slane %v707, 4
        %v729 = vsel %vm477, %v713, %v728
        %v731 = vunpack.c.l.s4 1934713408
        %v732 = vunpack.c.0.s8 %v731
        %v733 = vperm.slane %v727, %v732
        %v735 = vunpack.c.l.s4 1934713408
        %v736 = vunpack.c.0.s8 %v735
        %v737 = vperm.slane %v729, %v736
        %v738 = vrot.slane %v733, 4
        %v739 = vsel %vm477, %v738, %v721
        %v740 = vrot.slane %v721, 4
        %v741 = vsel %vm477, %v733, %v740
        %v742 = vrot.slane %v737, 4
        %v743 = vsel %vm477, %v742, %v725
        %v744 = vrot.slane %v725, 4
        %v745 = vsel %vm477, %v737, %v744
        %746 = vst.msk [vmem:[%s425] sm:$0xff] %vm587, %v739
        %747 = vst.msk [vmem:[%s425 + $0x8] sm:$0xff] %vm587, %v741
        %748 = vst.msk [vmem:[%s425 + $0x10] sm:$0xff] %vm587, %v743
        %749 = vst.msk [vmem:[%s425 + $0x18] sm:$0xff] %vm587, %v745
        %v750 = vld [vmem:[%s376] sm:$0xff]
        %s751 = scalar_lea.vmem [#allocation8], 64
        %v752 = vld [vmem:[%s751] sm:$0xff]
        %v753 = vld [vmem:[%s751 + $0x8] sm:$0xff]
        %v754 = vld [vmem:[%s751 + $0x10] sm:$0xff]
        %v755 = vld [vmem:[%s751 + $0x18] sm:$0xff]
        %s756 = scalar_lea.vmem %s4, 2
        %v757 = vld [vmem:[%s756] sm:$0x1]
        %v759 = vperm.slane %v757, 0
        %v762 = vsel %vm442, %v750, 0
        %764 = vmatpush.msra.mxu0 0.0
        %765 = vmatpush.msra.mxu0 0.0
        %766 = vmatpush.msra.mxu0 0.0
        %767 = vmatpush.msra.mxu0 0.0
        %768 = vmatpush.msra.mxu0 0.0
        %769 = vmatpush.msra.mxu0 0.0
        %770 = vmatpush.msra.mxu0 0.0
        %771 = vmatpush.msra.mxu0 0.0
        %772 = vmatpush.msra.mxu0 0.0
        %773 = vmatpush.msra.mxu0 0.0
        %774 = vmatpush.msra.mxu0 0.0
        %775 = vmatpush.msra.mxu0 0.0
        %776 = vmatpush.msra.mxu0 %v755
        %777 = vmatpush.msra.mxu0 %v754
        %778 = vmatpush.msra.mxu0 %v753
        %779 = vmatpush.msra.mxu0 %v752
        %780 = vmatmul.f32.gmra.mxu0 %v762
        %v781 = vpop.f32.mrf.mxu0
        %v782 = vadd.f32 %v759, %v781
        %783 = vdwg.mxu0
        %785 = vrot.lane.b32.xlu0 %v782, 120
        %v786 = vpop.permute.xlu0 %785
        %788 = vrot.lane.b32.xlu0 %v782, 112
        %v789 = vpop.permute.xlu0 %788
        %791 = vrot.lane.b32.xlu0 %v782, 104
        %v792 = vpop.permute.xlu0 %791
        %v794 = vrot.slane %v789, 4
        %v795 = vsel %vm477, %v794, %v782
        %v796 = vrot.slane %v782, 4
        %v797 = vsel %vm477, %v789, %v796
        %v799 = vunpack.c.l.s4 1983009808
        %v800 = vunpack.c.0.s8 %v799
        %v801 = vperm.slane %v795, %v800
        %v803 = vunpack.c.l.s4 1983009808
        %v804 = vunpack.c.0.s8 %v803
        %v805 = vperm.slane %v797, %v804
        %v806 = vrot.slane %v792, 4
        %v807 = vsel %vm477, %v806, %v786
        %v808 = vrot.slane %v786, 4
        %v809 = vsel %vm477, %v792, %v808
        %v811 = vunpack.c.l.s4 1983009808
        %v812 = vunpack.c.0.s8 %v811
        %v813 = vperm.slane %v807, %v812
        %v815 = vunpack.c.l.s4 1983009808
        %v816 = vunpack.c.0.s8 %v815
        %v817 = vperm.slane %v809, %v816
        %v818 = vrot.slane %v813, 4
        %v819 = vsel %vm477, %v818, %v801
        %v820 = vrot.slane %v801, 4
        %v821 = vsel %vm477, %v813, %v820
        %v823 = vunpack.c.l.s4 1934713408
        %v824 = vunpack.c.0.s8 %v823
        %v825 = vperm.slane %v819, %v824
        %v827 = vunpack.c.l.s4 1934713408
        %v828 = vunpack.c.0.s8 %v827
        %v829 = vperm.slane %v821, %v828
        %v830 = vrot.slane %v817, 4
        %v831 = vsel %vm477, %v830, %v805
        %v832 = vrot.slane %v805, 4
        %v833 = vsel %vm477, %v817, %v832
        %v835 = vunpack.c.l.s4 1934713408
        %v836 = vunpack.c.0.s8 %v835
        %v837 = vperm.slane %v831, %v836
        %v839 = vunpack.c.l.s4 1934713408
        %v840 = vunpack.c.0.s8 %v839
        %v841 = vperm.slane %v833, %v840
        %v842 = vrot.slane %v825, 4
        %v843 = vsel %vm477, 0.0, %v842
        %v844 = vrot.slane %v829, 4
        %v845 = vsel %vm477, 0.0, %v844
        %v846 = vrot.slane %v837, 4
        %v847 = vsel %vm477, 0.0, %v846
        %v848 = vrot.slane %v841, 4
        %v849 = vsel %vm477, 0.0, %v848
        %v850 = vsel %vm477, %v844, %v825
        %v852 = vunpack.c.l.s4 1983009808
        %v853 = vunpack.c.0.s8 %v852
        %v854 = vperm.slane %v850, %v853
        %v855 = vrot.slane %v845, 4
        %v856 = vsel %vm477, %v855, %v843
        %v858 = vunpack.c.l.s4 1983009808
        %v859 = vunpack.c.0.s8 %v858
        %v860 = vperm.slane %v856, %v859
        %v861 = vsel %vm477, %v848, %v837
        %v863 = vunpack.c.l.s4 1983009808
        %v864 = vunpack.c.0.s8 %v863
        %v865 = vperm.slane %v861, %v864
        %v866 = vrot.slane %v849, 4
        %v867 = vsel %vm477, %v866, %v847
        %v869 = vunpack.c.l.s4 1983009808
        %v870 = vunpack.c.0.s8 %v869
        %v871 = vperm.slane %v867, %v870
        %v872 = vrot.slane %v860, 4
        %v873 = vsel %vm477, %v872, %v854
        %v874 = vrot.slane %v854, 4
        %v875 = vsel %vm477, %v860, %v874
        %v877 = vunpack.c.l.s4 1934713408
        %v878 = vunpack.c.0.s8 %v877
        %v879 = vperm.slane %v873, %v878
        %v881 = vunpack.c.l.s4 1934713408
        %v882 = vunpack.c.0.s8 %v881
        %v883 = vperm.slane %v875, %v882
        %v884 = vrot.slane %v871, 4
        %v885 = vsel %vm477, %v884, %v865
        %v886 = vrot.slane %v865, 4
        %v887 = vsel %vm477, %v871, %v886
        %v889 = vunpack.c.l.s4 1934713408
        %v890 = vunpack.c.0.s8 %v889
        %v891 = vperm.slane %v885, %v890
        %v893 = vunpack.c.l.s4 1934713408
        %v894 = vunpack.c.0.s8 %v893
        %v895 = vperm.slane %v887, %v894
        %v896 = vrot.slane %v891, 4
        %v897 = vsel %vm477, %v896, %v879
        %v898 = vrot.slane %v879, 4
        %v899 = vsel %vm477, %v891, %v898
        %v900 = vrot.slane %v895, 4
        %v901 = vsel %vm477, %v900, %v883
        %v902 = vrot.slane %v883, 4
        %v903 = vsel %vm477, %v895, %v902
        %904 = vst.msk [vmem:[%s432] sm:$0xff] %vm587, %v897
        %905 = vst.msk [vmem:[%s432 + $0x8] sm:$0xff] %vm587, %v899
        %906 = vst.msk [vmem:[%s432 + $0x10] sm:$0xff] %vm587, %v901
        %907 = vst.msk [vmem:[%s432 + $0x18] sm:$0xff] %vm587, %v903
        %s908 = sand.u32 %s180, 1
        %s909 = scalar_lea.sflag [#allocation4], %s908
        %s910 = sand.u32 %s180, 1
        %s911 = smul.addr %s910, 32
        %s912 = scalar_lea.vmem [#allocation10], %s911
        %s913 = sand.u32 %s32, 1
        %s914 = scalar_lea.sflag [#allocation12], %s913
        %s915 = sand.u32 %s208, 1
        %s916 = smul.addr %s915, 32
        %s917 = scalar_lea.vmem [#allocation11], %s916
        %s918 = sand.u32 %s32, 1
        %s919 = scalar_lea.sflag [#allocation12], %s918
        %s920 = sand.u32 %s236, 1
        %s921 = smul.addr %s920, 32
        %s922 = scalar_lea.vmem [#allocation13], %s921
        // Predicated region
        $region57: #{tpu_custom_call.1} parent=39 // pred_check
          %p923 = pneg %p190
        $region58: #{tpu_custom_call.1} parent=39 // pred_check_branch
          %925 = sbr.rel (%p923) target = $region60
        $region59: #{tpu_custom_call.1} parent=39 // pred_region
          %927 = vsyncadd %s909, 0
          %s928 = smul.addr %s36, 4
          %s929 = sadd.s32 %s37, %s928
          %s930 = smul.addr %s929, 8
          %s931 = scalar_lea.hbm %s5, %s930
          %s932 = sshll.u32 %s912, 4
          %s933 = int_to_ptr.vmem [resolvable:$true] %s932
          %s934 = sshll.u32 %s931, 4
          %s935 = int_to_ptr.hbm [resolvable:$true] %s934
          %940 = dma.vmem_to_hbm [thread:$0]  %s933, 512, %s935, %s909, 128, 128, 8
        $region60: #{tpu_custom_call.1} parent=39 // pred_fallthru
          _
        // Predicated region
        $region61: #{tpu_custom_call.1} parent=39 // pred_check
          %p941 = pneg %p218
        $region62: #{tpu_custom_call.1} parent=39 // pred_check_branch
          %943 = sbr.rel (%p941) target = $region64
        $region63: #{tpu_custom_call.1} parent=39 // pred_region
          %945 = vsyncadd %s914, 0
          %s946 = smul.addr %s36, 4
          %s947 = sadd.s32 %s37, %s946
          %s948 = smul.addr %s947, 8
          %s949 = scalar_lea.hbm %s6, %s948
          %s950 = sshll.u32 %s917, 4
          %s951 = int_to_ptr.vmem [resolvable:$true] %s950
          %s952 = sshll.u32 %s949, 4
          %s953 = int_to_ptr.hbm [resolvable:$true] %s952
          %958 = dma.vmem_to_hbm [thread:$0]  %s951, 512, %s953, %s914, 128, 128, 8
        $region64: #{tpu_custom_call.1} parent=39 // pred_fallthru
          _
        // Predicated region
        $region65: #{tpu_custom_call.1} parent=39 // pred_check
          %p959 = pneg %p246
        $region66: #{tpu_custom_call.1} parent=39 // pred_check_branch
          %961 = sbr.rel (%p959) target = $region68
        $region67: #{tpu_custom_call.1} parent=39 // pred_region
          %963 = vsyncadd %s919, 0
          %s964 = smul.addr %s36, 4
          %s965 = sadd.s32 %s37, %s964
          %s966 = smul.addr %s965, 8
          %s967 = scalar_lea.hbm %s7, %s966
          %s968 = sshll.u32 %s922, 4
          %s969 = int_to_ptr.vmem [resolvable:$true] %s968
          %s970 = sshll.u32 %s967, 4
          %s971 = int_to_ptr.hbm [resolvable:$true] %s970
          %976 = dma.vmem_to_hbm [thread:$0]  %s969, 512, %s971, %s919, 128, 128, 8
        $region68: #{tpu_custom_call.1} parent=39 // pred_fallthru
          _
      $region40: #{tpu_custom_call.1} parent=5 // pred_fallthru
        _
      %p977 = scmp.le.s32.totalorder 2, %s27
      // Predicated region
      $region69: #{tpu_custom_call.1} parent=5 // pred_check
        %p978 = pneg %p977
      $region70: #{tpu_custom_call.1} parent=5 // pred_check_branch
        %980 = sbr.rel (%p978) target = $region72
      $region71: #{tpu_custom_call.1} parent=5 // pred_region
        %s981 = ssub.s32 %s27, 2
        // Predicated region
        $region73: #{tpu_custom_call.1} parent=71 // pred_check
          %p982 = pneg %p196
        $region74: #{tpu_custom_call.1} parent=71 // pred_check_branch
          %984 = sbr.rel (%p982) target = $region76
        $region75: #{tpu_custom_call.1} parent=71 // pred_region
          %s985 = sand.u32 %s181, 1
          %s986 = scalar_lea.sflag [#allocation4], %s985
          %s987 = sand.u32 %s181, 1
          %s988 = smul.addr %s987, 32
          %s989 = scalar_lea.vmem [#allocation10], %s988
          %991 = dma.done %s986, 512
        $region76: #{tpu_custom_call.1} parent=71 // pred_fallthru
          _
        // Predicated region
        $region77: #{tpu_custom_call.1} parent=71 // pred_check
          %p992 = pneg %p224
        $region78: #{tpu_custom_call.1} parent=71 // pred_check_branch
          %994 = sbr.rel (%p992) target = $region80
        $region79: #{tpu_custom_call.1} parent=71 // pred_region
          %s995 = sand.u32 %s33, 1
          %s996 = scalar_lea.sflag [#allocation12], %s995
          %s997 = sand.u32 %s209, 1
          %s998 = smul.addr %s997, 32
          %s999 = scalar_lea.vmem [#allocation11], %s998
          %1001 = dma.done %s996, 512
        $region80: #{tpu_custom_call.1} parent=71 // pred_fallthru
          _
        // Predicated region
        $region81: #{tpu_custom_call.1} parent=71 // pred_check
          %p1002 = pneg %p252
        $region82: #{tpu_custom_call.1} parent=71 // pred_check_branch
          %1004 = sbr.rel (%p1002) target = $region84
        $region83: #{tpu_custom_call.1} parent=71 // pred_region
          %s1005 = sand.u32 %s33, 1
          %s1006 = scalar_lea.sflag [#allocation12], %s1005
          %s1007 = sand.u32 %s237, 1
          %s1008 = smul.addr %s1007, 32
          %s1009 = scalar_lea.vmem [#allocation13], %s1008
          %1011 = dma.done %s1006, 512
        $region84: #{tpu_custom_call.1} parent=71 // pred_fallthru
          _
      $region72: #{tpu_custom_call.1} parent=5 // pred_fallthru
        _
    $region6: #{tpu_custom_call.1} parent=1 // loop_footer
      %s31 = sadd.s32 1, %s27
    $region7: #{tpu_custom_call.1} parent=1 // loop_footer_branch
      %26 = sbr.rel target = $region3
    $region8: #{tpu_custom_call.1} parent=1 // loop_exit
      _
    %1012 = vsyncpa [#allocation3], 1
    %s1013 = scalar_lea.sflag [#allocation3], 1
    %1014 = vsyncpa %s1013, 1
    %1015 = vsyncpa [#allocation6], 1
    %s1016 = scalar_lea.sflag [#allocation6], 1
    %1017 = vsyncpa %s1016, 1
    %1018 = vsyncpa [#allocation9], 1
    %1019 = vsyncpa [#allocation4], 1
    %s1020 = scalar_lea.sflag [#allocation4], 1
    %1021 = vsyncpa %s1020, 1
    %1022 = vsyncpa [#allocation12], 1
    %s1023 = scalar_lea.sflag [#allocation12], 1
    %1024 = vsyncpa %s1023, 1

</llo_original>
